<compile_context>
chip_gen: v5e
topology: v5e:2x2
jax: 0.10.0
libtpu: 0.0.40
codegen_flags: <defaults>
</compile_context>

<pallas_src>
import functools

import jax
import jax.numpy as jnp
from jax import lax
from jax.experimental import pallas as pl
from jax.experimental.pallas import tpu as pltpu

_LANES = 128
_ACC_ROWS = 64  # accumulator height: 8 independent f32 vreg add-chains


def _cdiv(a: int, b: int) -> int:
    return -(-a // b)


def _round_up(x: int, m: int) -> int:
    return ((x + m - 1) // m) * m


def _sublane_multiple(dtype) -> int:
    """Minimum sublane tile for a dtype: 8 (4B), 16 (2B), 32 (1B)."""
    itemsize = jnp.dtype(dtype).itemsize
    return {4: 8, 2: 16, 1: 32}.get(itemsize, 8)


def _tensorcores_per_chip() -> int:
    """Best-effort TC-per-chip query; defaults to 1 (safe on v5e/v6e)."""
    try:
        info = pltpu.get_tpu_info()
        for name in ("num_cores", "core_count", "num_tensorcores",
                     "tensorcores_per_chip"):
            val = getattr(info, name, None)
            if isinstance(val, int) and 1 <= val <= 8:
                return min(int(val), 2)
    except Exception:
        pass
    try:
        kind = jax.devices()[0].device_kind.lower()
        if "v7" in kind or "tpu7" in kind or "7x" in kind:
            return 2
    except Exception:
        pass
    return 1


def _l2_sumsq_kernel(x_ref, o_ref, acc_ref, *, scale, valid_rows, tm,
                     tiles_per_chunk, needs_mask):
    """Accumulate x*x of (tm, R) row tiles into a wide f32 VMEM accumulator."""
    i = pl.program_id(1)  # innermost axis = reduction over row tiles

    @pl.when(i == 0)
    def _():
        acc_ref[...] = jnp.zeros_like(acc_ref)

    x = x_ref[...].astype(jnp.float32)  # (tm, R)

    if needs_mask:
        # Only the globally-last tile is ragged; zero rows past the real end
        # (partial edge blocks contain unspecified data).
        c = pl.program_id(0)
        row0 = (c * tiles_per_chunk + i) * tm
        row_ids = row0 + lax.broadcasted_iota(jnp.int32, x.shape, 0)
        x = jnp.where(row_ids < valid_rows, x, 0.0)

    sq = x * x  # |x|^2 for real inputs
    acc_rows = acc_ref.shape[0]
    # Fold (tm, R) into (tm//acc_rows, acc_rows, R) and sum the leading
    # vreg-group axis: pure VPU adds, split into `acc_rows/8` independent
    # chains so the 4 VALU slots can interleave (no XLU work in the hot loop).
    acc_ref[...] += jnp.sum(sq.reshape(-1, acc_rows, x.shape[1]), axis=0)

    @pl.when(i == pl.num_programs(1) - 1)
    def _():
        # One dense store per chunk with weight/rank folded in.
        o_ref[...] = acc_ref[...] * scale


def _factor_partial_sumsq(factor, scale, target_block_bytes, num_tc):
    """One pallas_call over a single (B, R) factor; returns scaled partials."""
    B, R = factor.shape
    dtype = factor.dtype
    itemsize = jnp.dtype(dtype).itemsize
    sub = _sublane_multiple(dtype)

    # Rows per tile from the byte budget (full-width R columns, zero copies).
    tm = (target_block_bytes // max(R * itemsize, 1)) // sub * sub
    tm = max(sub, tm)
    tm = min(tm, _round_up(B, sub))
    if tm >= _ACC_ROWS:
        tm = (tm // _ACC_ROWS) * _ACC_ROWS  # 64 is a multiple of 8/16/32
        acc_rows = _ACC_ROWS
    else:
        acc_rows = tm

    n_tiles = _cdiv(B, tm)
    # Only shard across chunks when the chip has >1 TC and it costs nothing
    # (no padded tiles, enough tiles to matter).
    n_chunks = num_tc if (num_tc > 1 and n_tiles % num_tc == 0
                          and n_tiles >= 2 * num_tc) else 1
    tiles_per_chunk = n_tiles // n_chunks
    needs_mask = (n_tiles * tm != B)

    lanes = _round_up(R, _LANES)
    block_bytes = tm * lanes * itemsize
    vmem_limit = int(min(max(2 * block_bytes + (8 << 20), 32 << 20), 48 << 20))

    kernel = functools.partial(
        _l2_sumsq_kernel, scale=scale, valid_rows=B, tm=tm,
        tiles_per_chunk=tiles_per_chunk, needs_mask=needs_mask)

    partials = pl.pallas_call(
        kernel,
        out_shape=jax.ShapeDtypeStruct((n_chunks * acc_rows, R), jnp.float32),
        grid_spec=pltpu.PrefetchScalarGridSpec(
            num_scalar_prefetch=0,
            grid=(n_chunks, tiles_per_chunk),
            in_specs=[
                pl.BlockSpec((tm, R),
                             lambda c, i, _t=tiles_per_chunk: (c * _t + i, 0)),
            ],
            out_specs=pl.BlockSpec((acc_rows, R), lambda c, i: (c, 0)),
            scratch_shapes=[pltpu.VMEM((acc_rows, R), jnp.float32)],
        ),
        compiler_params=pltpu.CompilerParams(
            dimension_semantics=("parallel", "arbitrary"),
            vmem_limit_bytes=vmem_limit,
        ),
        cost_estimate=pl.CostEstimate(
            flops=3 * B * R,
            transcendentals=0,
            bytes_accessed=B * R * itemsize + n_chunks * acc_rows * R * 4,
        ),
    )(factor)
    return partials


def l2_forward(factors, weight: float) -> jax.Array:
    """Pallas-backed equivalent of L2.forward(factors)."""
    assert len(factors) > 0
    assert all(f.ndim == 2 for f in factors), "factors are expected to be 2-D"
    # TODO(synk): complex factors would need x * conj(x) instead of x * x.
    assert not any(jnp.iscomplexobj(f) for f in factors), "complex unsupported"

    # factors[0][0].shape[0] in the PyTorch module == rank of the first factor.
    rank = factors[0].shape[1]
    scale = float(weight) / float(rank)

    num_tc = _tensorcores_per_chip()
    target_block_bytes = (16 << 20) if num_tc > 1 else (8 << 20)

    total = jnp.zeros((), jnp.float32)
    for f in factors:
        partials = _factor_partial_sumsq(f, scale, target_block_bytes, num_tc)
        # Tiny final cross-lane reduce of the (already scaled) partials stays
        # outside the kernel on purpose.
        total = total + jnp.sum(partials)
    return total


def l2_reference(factors, weight: float) -> jax.Array:
    """Pure-JAX reference matching the PyTorch loop exactly."""
    norm = jnp.float32(0.0)
    for factor in factors:
        for f in factor:  # iterate rows, like `for f in factor` in torch
            norm = norm + jnp.float32(weight) * jnp.sum(
                jnp.abs(f.astype(jnp.float32)) ** 2)
    return norm / jnp.float32(factors[0][0].shape[0])


if __name__ == "__main__":
    key = jax.random.PRNGKey(0)
    k1, k2, k3 = jax.random.split(key, 3)

    # Small (batch, rank) factors; the 12-row factor exercises the in-kernel
    # ragged-tail mask (no wrapper-side padding), the others the clean path.
    factors = (
        jax.random.normal(k1, (8, 32), dtype=jnp.float32),
        jax.random.normal(k2, (12, 32), dtype=jnp.float32),
        jax.random.normal(k3, (8, 32), dtype=jnp.float32),
    )
    weight = 0.05  # deterministic "parameter" of the module

    out = jax.block_until_ready(l2_forward(factors, weight))
    ref = jax.block_until_ready(l2_reference(factors, weight))

    assert out.shape == ()
    assert jnp.allclose(out, ref, rtol=1e-5, atol=1e-6), (out, ref)

    print("KERNEL_OK")
</pallas_src>

<mosaic_0001>
module attributes {stable_mosaic.version = 11 : i64} {
  func.func @_l2_sumsq_kernel(%arg0: i32, %arg1: i32, %arg2: memref<8x32xf32, #tpu.memory_space<vmem>>, %arg3: memref<8x32xf32, #tpu.memory_space<vmem>>, %arg4: memref<8x32xf32, #tpu.memory_space<vmem>>) attributes {dimension_semantics = [#tpu.dimension_semantics<parallel>, #tpu.dimension_semantics<arbitrary>], iteration_bounds = array<i64: 1, 1>, scalar_prefetch = 0 : i64, scratch_operands = 1 : i64, tpu.core_type = #tpu.core_type<tc>, window_params = [{transform_indices = @transform_0, window_bounds = array<i64: 8, 32>}, {transform_indices = @transform_1, window_bounds = array<i64: 8, 32>}]} {
    %c0_i32 = arith.constant 0 : i32
    %0 = arith.cmpi eq, %arg1, %c0_i32 : i32
    %1 = arith.extui %0 : i1 to i32
    %c0_i32_0 = arith.constant 0 : i32
    %2 = arith.cmpi ne, %1, %c0_i32_0 : i32
    scf.if %2 {
      %cst_8 = arith.constant 0.000000e+00 : f32
      %13 = vector.broadcast %cst_8 : f32 to vector<8x32xf32>
      %c0_9 = arith.constant 0 : index
      %c0_10 = arith.constant 0 : index
      %14 = vector.load %arg4[%c0_9, %c0_10] : memref<8x32xf32, #tpu.memory_space<vmem>>, vector<8x32xf32>
      tpu.vector_store %arg4[%c0_9, %c0_10], %13 {strides = array<i32>} : memref<8x32xf32, #tpu.memory_space<vmem>>, vector<8x32xf32>,
    } else {
    }
    %c0 = arith.constant 0 : index
    %c0_1 = arith.constant 0 : index
    %3 = vector.load %arg2[%c0, %c0_1] : memref<8x32xf32, #tpu.memory_space<vmem>>, vector<8x32xf32>
    %4 = arith.mulf %3, %3 : vector<8x32xf32>
    %c0_2 = arith.constant 0 : index
    %c0_3 = arith.constant 0 : index
    %5 = vector.load %arg4[%c0_2, %c0_3] : memref<8x32xf32, #tpu.memory_space<vmem>>, vector<8x32xf32>
    %6 = vector.shape_cast %4 : vector<8x32xf32> to vector<1x8x32xf32>
    %cst = arith.constant dense<0.000000e+00> : vector<8x32xf32>
    %7 = vector.multi_reduction <add>, %6, %cst [0] : vector<1x8x32xf32> to vector<8x32xf32>
    %8 = arith.addf %5, %7 : vector<8x32xf32>
    %c0_4 = arith.constant 0 : index
    %c0_5 = arith.constant 0 : index
    %9 = vector.load %arg4[%c0_4, %c0_5] : memref<8x32xf32, #tpu.memory_space<vmem>>, vector<8x32xf32>
    tpu.vector_store %arg4[%c0_4, %c0_5], %8 {strides = array<i32>} : memref<8x32xf32, #tpu.memory_space<vmem>>, vector<8x32xf32>,
    %c0_i32_6 = arith.constant 0 : i32
    %10 = arith.cmpi eq, %arg1, %c0_i32_6 : i32
    %11 = arith.extui %10 : i1 to i32
    %c0_i32_7 = arith.constant 0 : i32
    %12 = arith.cmpi ne, %11, %c0_i32_7 : i32
    scf.if %12 {
      %c0_8 = arith.constant 0 : index
      %c0_9 = arith.constant 0 : index
      %13 = vector.load %arg4[%c0_8, %c0_9] : memref<8x32xf32, #tpu.memory_space<vmem>>, vector<8x32xf32>
      %cst_10 = arith.constant 1.562500e-03 : f32
      %14 = vector.broadcast %cst_10 : f32 to vector<8x32xf32>
      %15 = arith.mulf %13, %14 : vector<8x32xf32>
      %c0_11 = arith.constant 0 : index
      %c0_12 = arith.constant 0 : index
      %16 = vector.load %arg3[%c0_11, %c0_12] : memref<8x32xf32, #tpu.memory_space<vmem>>, vector<8x32xf32>
      tpu.vector_store %arg3[%c0_11, %c0_12], %15 {strides = array<i32>} : memref<8x32xf32, #tpu.memory_space<vmem>>, vector<8x32xf32>,
    } else {
    }
    return
  }
  func.func @transform_0(%arg0: i32, %arg1: i32) -> (i32, i32) {
    %c1_i32 = arith.constant 1 : i32
    %0 = arith.muli %arg0, %c1_i32 : i32
    %1 = arith.addi %0, %arg1 : i32
    %c0_i32 = arith.constant 0 : i32
    %c0_i32_0 = arith.constant 0 : i32
    return %1, %c0_i32 : i32, i32
  }
  func.func @transform_1(%arg0: i32, %arg1: i32) -> (i32, i32) {
    %c0_i32 = arith.constant 0 : i32
    %c0_i32_0 = arith.constant 0 : i32
    return %arg0, %c0_i32 : i32, i32
  }
}

</mosaic_0001>

<llo_original>
// kernel: tpu_custom_call.1
$region0: #{tpu_custom_call.1}
  #allocation0 [shape = 'u32[]', space=smem, size = 0x4, offset = 0x4, fixed_abs, tag = 'smem constant byte address 0x4 - core index']
  #allocation1 [shape = 'u32[72,128]{1,0:T(1,128)}', space=vmem, size = 0x9000, scoped, tag = 'internal scratch']
  #allocation2 [shape = 'f32[8,32]{1,0:T(8,128)}', space=vmem, size = 0x1000, scoped, tag = 'scratch operand']
  %s0 = inlined_call_operand.hbm [shape: f32[8,32], index: 0, kind: input, shape index: {}]
  %s1 = inlined_call_operand.hbm [shape: f32[8,32], index: 1, kind: output, shape index: {}]
  %s2 = sld [smem:[#allocation0]]
  $region26: #{tpu_custom_call.1} parent=0
    _
  %s4 = ssub.s32 1, %s2
  %s5 = scalar_select 0, %s4, %s2
  $region1: #{tpu_custom_call.1} parent=0
    #allocation3 [shape = 'u8[4096]{0}', space=vmem, size = 0x1000, scoped, tag = 'input window, operand 0, single buffered']
    #allocation4 [shape = 's32[1]{0}', space=sflag, size = 0x4, scoped, tag = 'scoped memory for tpu_custom_call.1']
    #allocation5 [shape = 's32[1]{0}', space=sflag, size = 0x4, scoped, tag = 'scoped memory for tpu_custom_call.1']
    #allocation6 [shape = 'u8[4096]{0}', space=vmem, size = 0x1000, scoped, tag = 'output window, operand 0, single buffered']
    %6 = vsyncpa [#allocation4], 0
    %7 = vsyncpa [#allocation5], 0
    // Predicated region
    $region2: #{tpu_custom_call.1} parent=1 // pred_check
      _
    $region3: #{tpu_custom_call.1} parent=1 // pred_check_branch
      %9 = sbr.rel (0) target = $region5
    $region4: #{tpu_custom_call.1} parent=1 // pred_region
      %s10 = sadd.s32 0, 0
      %12 = vsyncadd [#allocation4], 0
      %s13 = smul.addr %s10, 8
      %s14 = scalar_lea.hbm %s0, %s13
      %s16 = sshll.u32 %s14, 4
      %s17 = int_to_ptr.hbm [resolvable:$true] %s16
      %s18 = sshll.u32 [#allocation3], 4
      %s19 = int_to_ptr.vmem [resolvable:$true] %s18
      %21 = dma.hbm_to_vmem [thread:$0]  %s17, 128, %s19, [#allocation4]
    $region5: #{tpu_custom_call.1} parent=1 // pred_fallthru
      _
    // Predicated region
    $region6: #{tpu_custom_call.1} parent=1 // pred_check
      _
    $region7: #{tpu_custom_call.1} parent=1 // pred_check_branch
      %23 = sbr.rel (0) target = $region9
    $region8: #{tpu_custom_call.1} parent=1 // pred_region
      %25 = dma.done [#allocation4], 128
    $region9: #{tpu_custom_call.1} parent=1 // pred_fallthru
      _
    %s26 = sadd.s32 0, 0
    %p27 = scmp.eq.s32.totalorder 0, 0
    // Predicated region
    $region10: #{tpu_custom_call.1} parent=1 // pred_check
      %p28 = pneg %p27
    $region11: #{tpu_custom_call.1} parent=1 // pred_check_branch
      %30 = sbr.rel (%p28) target = $region13
    $region12: #{tpu_custom_call.1} parent=1 // pred_region
      %vm31 = vcmask 261120
      %32 = vst.msk [vmem:[#allocation2] sm:$0xff] %vm31, 0.0
    $region13: #{tpu_custom_call.1} parent=1 // pred_fallthru
      _
    %v33 = vld [vmem:[#allocation3] sm:$0xff]
    %v34 = vmul.f32 %v33, %v33
    %v35 = vld [vmem:[#allocation2] sm:$0xff]
    %v36 = vadd.f32 %v34, 0.0
    %v37 = vadd.f32 %v35, %v36
    %vm38 = vcmask 261120
    %39 = vst.msk [vmem:[#allocation2] sm:$0xff] %vm38, %v37
    // Predicated region
    $region14: #{tpu_custom_call.1} parent=1 // pred_check
      %p40 = pneg %p27
    $region15: #{tpu_custom_call.1} parent=1 // pred_check_branch
      %42 = sbr.rel (%p40) target = $region17
    $region16: #{tpu_custom_call.1} parent=1 // pred_region
      %v43 = vld [vmem:[#allocation2] sm:$0xff]
      %v44 = vmul.f32 %v43, 0.0015625
      %45 = vst.msk [vmem:[#allocation6] sm:$0xff] %vm38, %v44
    $region17: #{tpu_custom_call.1} parent=1 // pred_fallthru
      _
    // Predicated region
    $region18: #{tpu_custom_call.1} parent=1 // pred_check
      _
    $region19: #{tpu_custom_call.1} parent=1 // pred_check_branch
      %47 = sbr.rel (0) target = $region21
    $region20: #{tpu_custom_call.1} parent=1 // pred_region
      %49 = vsyncadd [#allocation5], 0
      %s51 = sshll.u32 [#allocation6], 4
      %s52 = int_to_ptr.vmem [resolvable:$true] %s51
      %s53 = sshll.u32 %s1, 4
      %s54 = int_to_ptr.hbm [resolvable:$true] %s53
      %56 = dma.vmem_to_hbm [thread:$0]  %s52, 128, %s54, [#allocation5]
    $region21: #{tpu_custom_call.1} parent=1 // pred_fallthru
      _
    // Predicated region
    $region22: #{tpu_custom_call.1} parent=1 // pred_check
      _
    $region23: #{tpu_custom_call.1} parent=1 // pred_check_branch
      %58 = sbr.rel (0) target = $region25
    $region24: #{tpu_custom_call.1} parent=1 // pred_region
      %60 = dma.done [#allocation5], 128
    $region25: #{tpu_custom_call.1} parent=1 // pred_fallthru
      _
    %61 = vsyncpa [#allocation4], 1
    %62 = vsyncpa [#allocation5], 1

</llo_original>
